<compile_context>
chip_gen: v7x
topology: tpu7x:2x2x1
jax: 0.10.0
libtpu: 0.0.40
codegen_flags: <defaults>
</compile_context>

<pallas_src>
import functools

import jax
import jax.numpy as jnp
from jax.experimental import pallas as pl
from jax.experimental.pallas import tpu as pltpu


def _gcns_kernel(x_ref, w1t_ref, b1_ref, w2_ref, o_ref, *, loop):
    # x_ref:   (TB, S, N) activation tile for the current batch slice
    # w1t_ref: (L, N, N)  conv1 weights, pre-transposed on host (in_ch, out_ch)
    # b1_ref:  (L, 1, N)  conv1 bias
    # w2_ref:  (L, S, S)  conv2 weights (no bias)
    TB, S, N = x_ref.shape
    # Leading-dim reshape (TB, S, N) -> (TB*S, N) is layout-free.
    h = x_ref[...].reshape(TB * S, N).astype(jnp.float32)

    for l in range(loop):
        w1t = w1t_ref[l]   # (N, N), already transposed & in compute dtype
        b1 = b1_ref[l]     # (1, N)
        w2 = w2_ref[l]     # (S, S)

        # conv1: mix the last (node_dim) axis as ONE wide dot, M = TB*S rows.
        t = jnp.dot(h, w1t, preferred_element_type=jnp.float32) + b1
        t = jnp.maximum(t + h, 0.0)

        # conv2: mix the num_nodes axis; the same resident w2 is reused across
        # the TB batch elements of this grid step (statically unrolled).
        t3 = t.reshape(TB, S, N)  # layout-free (split leading dim)
        h = jnp.concatenate(
            [jnp.dot(w2, t3[b], preferred_element_type=jnp.float32)
             for b in range(TB)],
            axis=0)               # (TB*S, N)

    # Final ReLU of GCNs.forward
    o_ref[...] = jnp.maximum(h, 0.0).reshape(TB, S, N).astype(o_ref.dtype)


def _pick_tb(B, S):
    """Batch-tile size: target >=256 rows on the first matmul's M axis
    (v6e/v7x MXU; v5e's 128-wide MXU saturates earlier), keep >=2 grid steps
    so v7x's two TensorCores both get work, and require TB | B."""
    desired = max(1, -(-256 // S))          # ceil(256 / S)
    if B >= 2:
        desired = min(desired, B // 2)      # keep at least 2 parallel steps
    desired = max(1, min(desired, B))
    tb = 1
    for d in range(1, desired + 1):
        if B % d == 0:
            tb = d
    return tb


def gcns_forward(x, w1, b1, w2, *, tb=None):
    """x: (B, S, N); w1: (L, N, N); b1: (L, 1, N); w2: (L, S, S)."""
    B, S, N = x.shape
    L = w1.shape[0]
    # The module builds gcn(dim, dim) and adds the residual t + x, which
    # requires square per-layer weights and S == N.
    assert S == N, "GCNs(gcn, dim, loop) implies num_nodes == node_dim == dim"
    assert w1.shape == (L, N, N) and b1.shape == (L, 1, N) and w2.shape == (L, S, S)

    compute_dtype = jnp.float32
    # Host-side layout/dtype plumbing: transpose conv1 weights once and cast
    # every weight to the compute dtype once (no per-layer work in the kernel).
    w1t = jnp.transpose(w1, (0, 2, 1)).astype(compute_dtype)
    b1c = b1.astype(compute_dtype)
    w2c = w2.astype(compute_dtype)

    if tb is None:
        tb = _pick_tb(B, S)
    assert B % tb == 0, "batch tile must divide B"
    grid = (B // tb,)

    # Explicit VMEM budget: double-buffered resident weights + a few
    # activation tiles + headroom, clamped to stay valid on v5e/v7x.
    itemsize = jnp.dtype(compute_dtype).itemsize
    weight_bytes = (w1t.size + b1c.size + w2c.size) * itemsize
    act_bytes = tb * S * N * 4
    vmem_limit = int(min(64 * 1024 * 1024,
                         max(2 * weight_bytes + 8 * act_bytes + (2 << 20),
                             16 * 1024 * 1024)))

    kernel = functools.partial(_gcns_kernel, loop=L)
    return pl.pallas_call(
        kernel,
        out_shape=jax.ShapeDtypeStruct((B, S, N), x.dtype),
        grid_spec=pltpu.PrefetchScalarGridSpec(
            num_scalar_prefetch=0,
            grid=grid,
            in_specs=[
                pl.BlockSpec((tb, S, N), lambda b: (b, 0, 0)),
                # Weight blocks have a constant index_map: the pipeline fetches
                # them once and keeps them resident across all grid steps.
                pl.BlockSpec((L, N, N), lambda b: (0, 0, 0)),
                pl.BlockSpec((L, 1, N), lambda b: (0, 0, 0)),
                pl.BlockSpec((L, S, S), lambda b: (0, 0, 0)),
            ],
            out_specs=pl.BlockSpec((tb, S, N), lambda b: (b, 0, 0)),
        ),
        compiler_params=pltpu.CompilerParams(
            dimension_semantics=("parallel",),
            vmem_limit_bytes=vmem_limit),
    )(x, w1t, b1c, w2c)


def gcns_reference(x, w1, b1, w2):
    h = x.astype(jnp.float32)
    L = w1.shape[0]
    for l in range(L):
        t = jnp.einsum("bsn,on->bso", h, w1[l]) + b1[l][None]
        t = jnp.maximum(t + h, 0.0)
        h = jnp.einsum("os,bsn->bon", w2[l], t)
    return jnp.maximum(h, 0.0).astype(x.dtype)


if __name__ == "__main__":
    B, DIM, LOOP = 2, 16, 2  # x: (b, num_nodes, node_dim), num_nodes == node_dim == dim

    key = jax.random.PRNGKey(0)
    kx, kw1, kb1, kw2 = jax.random.split(key, 4)

    x = jax.random.normal(kx, (B, DIM, DIM), dtype=jnp.float32)

    # Deterministic init mimicking PyTorch Conv1d default (uniform +/- 1/sqrt(fan_in)).
    bound = 1.0 / (DIM ** 0.5)
    w1 = jax.random.uniform(kw1, (LOOP, DIM, DIM), jnp.float32, -bound, bound)
    b1 = jax.random.uniform(kb1, (LOOP, 1, DIM), jnp.float32, -bound, bound)
    w2 = jax.random.uniform(kw2, (LOOP, DIM, DIM), jnp.float32, -bound, bound)

    out = jax.block_until_ready(gcns_forward(x, w1, b1, w2))
    ref = gcns_reference(x, w1, b1, w2)
    assert out.shape == (B, DIM, DIM)
    assert jnp.allclose(out, ref, atol=1e-5, rtol=1e-5)
    print("KERNEL_OK")
</pallas_src>

<mosaic_0001>
module attributes {stable_mosaic.version = 11 : i64} {
  func.func @_gcns_kernel(%arg0: i32, %arg1: memref<1x16x16xf32, #tpu.memory_space<vmem>>, %arg2: memref<2x16x16xf32, #tpu.memory_space<vmem>>, %arg3: memref<2x1x16xf32, #tpu.memory_space<vmem>>, %arg4: memref<2x16x16xf32, #tpu.memory_space<vmem>>, %arg5: memref<1x16x16xf32, #tpu.memory_space<vmem>>) attributes {dimension_semantics = [#tpu.dimension_semantics<parallel>], iteration_bounds = array<i64: 2>, scalar_prefetch = 0 : i64, scratch_operands = 0 : i64, tpu.core_type = #tpu.core_type<tc>, window_params = [{transform_indices = @transform_0, window_bounds = array<i64: 1, 16, 16>}, {pipeline_mode = #tpu.pipeline_mode<synchronous>, transform_indices = @transform_1, window_bounds = array<i64: 2, 16, 16>}, {pipeline_mode = #tpu.pipeline_mode<synchronous>, transform_indices = @transform_2, window_bounds = array<i64: 2, 1, 16>}, {pipeline_mode = #tpu.pipeline_mode<synchronous>, transform_indices = @transform_3, window_bounds = array<i64: 2, 16, 16>}, {transform_indices = @transform_4, window_bounds = array<i64: 1, 16, 16>}]} {
    %c0 = arith.constant 0 : index
    %c0_0 = arith.constant 0 : index
    %c0_1 = arith.constant 0 : index
    %0 = vector.load %arg1[%c0, %c0_0, %c0_1] : memref<1x16x16xf32, #tpu.memory_space<vmem>>, vector<1x16x16xf32>
    %1 = vector.shape_cast %0 : vector<1x16x16xf32> to vector<16x16xf32>
    %c0_2 = arith.constant 0 : index
    %c0_3 = arith.constant 0 : index
    %c0_4 = arith.constant 0 : index
    %2 = vector.load %arg2[%c0_2, %c0_3, %c0_4] : memref<2x16x16xf32, #tpu.memory_space<vmem>>, vector<1x16x16xf32>
    %3 = vector.shape_cast %2 : vector<1x16x16xf32> to vector<16x16xf32>
    %c0_5 = arith.constant 0 : index
    %c0_6 = arith.constant 0 : index
    %c0_7 = arith.constant 0 : index
    %4 = vector.load %arg3[%c0_5, %c0_6, %c0_7] : memref<2x1x16xf32, #tpu.memory_space<vmem>>, vector<1x1x16xf32>
    %5 = vector.shape_cast %4 : vector<1x1x16xf32> to vector<1x16xf32>
    %c0_8 = arith.constant 0 : index
    %c0_9 = arith.constant 0 : index
    %c0_10 = arith.constant 0 : index
    %6 = vector.load %arg4[%c0_8, %c0_9, %c0_10] : memref<2x16x16xf32, #tpu.memory_space<vmem>>, vector<1x16x16xf32>
    %7 = vector.shape_cast %6 : vector<1x16x16xf32> to vector<16x16xf32>
    %cst = arith.constant dense<0.000000e+00> : vector<16x16xf32>
    %8 = tpu.matmul %1, %3, %cst {dimension_numbers = #tpu.dot_dimension_numbers<[1], [0], [0], [1], [0, 0, 1, 1], [], []>} : vector<16x16xf32>, vector<16x16xf32>, vector<16x16xf32> -> vector<16x16xf32>
    %9 = vector.broadcast %5 : vector<1x16xf32> to vector<16x16xf32>
    %10 = arith.addf %8, %9 : vector<16x16xf32>
    %11 = arith.addf %10, %1 : vector<16x16xf32>
    %cst_11 = arith.constant 0.000000e+00 : f32
    %12 = vector.broadcast %cst_11 : f32 to vector<16x16xf32>
    %13 = arith.maximumf %11, %12 : vector<16x16xf32>
    %14 = vector.shape_cast %13 : vector<16x16xf32> to vector<1x16x16xf32>
    %15 = vector.shape_cast %14 : vector<1x16x16xf32> to vector<16x16xf32>
    %cst_12 = arith.constant dense<0.000000e+00> : vector<16x16xf32>
    %16 = tpu.matmul %7, %15, %cst_12 {dimension_numbers = #tpu.dot_dimension_numbers<[1], [0], [0], [1], [0, 0, 1, 1], [], []>} : vector<16x16xf32>, vector<16x16xf32>, vector<16x16xf32> -> vector<16x16xf32>
    %c1 = arith.constant 1 : index
    %c0_13 = arith.constant 0 : index
    %c0_14 = arith.constant 0 : index
    %17 = vector.load %arg2[%c1, %c0_13, %c0_14] : memref<2x16x16xf32, #tpu.memory_space<vmem>>, vector<1x16x16xf32>
    %18 = vector.shape_cast %17 : vector<1x16x16xf32> to vector<16x16xf32>
    %c1_15 = arith.constant 1 : index
    %c0_16 = arith.constant 0 : index
    %c0_17 = arith.constant 0 : index
    %19 = vector.load %arg3[%c1_15, %c0_16, %c0_17] : memref<2x1x16xf32, #tpu.memory_space<vmem>>, vector<1x1x16xf32>
    %20 = vector.shape_cast %19 : vector<1x1x16xf32> to vector<1x16xf32>
    %c1_18 = arith.constant 1 : index
    %c0_19 = arith.constant 0 : index
    %c0_20 = arith.constant 0 : index
    %21 = vector.load %arg4[%c1_18, %c0_19, %c0_20] : memref<2x16x16xf32, #tpu.memory_space<vmem>>, vector<1x16x16xf32>
    %22 = vector.shape_cast %21 : vector<1x16x16xf32> to vector<16x16xf32>
    %cst_21 = arith.constant dense<0.000000e+00> : vector<16x16xf32>
    %23 = tpu.matmul %16, %18, %cst_21 {dimension_numbers = #tpu.dot_dimension_numbers<[1], [0], [0], [1], [0, 0, 1, 1], [], []>} : vector<16x16xf32>, vector<16x16xf32>, vector<16x16xf32> -> vector<16x16xf32>
    %24 = vector.broadcast %20 : vector<1x16xf32> to vector<16x16xf32>
    %25 = arith.addf %23, %24 : vector<16x16xf32>
    %26 = arith.addf %25, %16 : vector<16x16xf32>
    %cst_22 = arith.constant 0.000000e+00 : f32
    %27 = vector.broadcast %cst_22 : f32 to vector<16x16xf32>
    %28 = arith.maximumf %26, %27 : vector<16x16xf32>
    %29 = vector.shape_cast %28 : vector<16x16xf32> to vector<1x16x16xf32>
    %30 = vector.shape_cast %29 : vector<1x16x16xf32> to vector<16x16xf32>
    %cst_23 = arith.constant dense<0.000000e+00> : vector<16x16xf32>
    %31 = tpu.matmul %22, %30, %cst_23 {dimension_numbers = #tpu.dot_dimension_numbers<[1], [0], [0], [1], [0, 0, 1, 1], [], []>} : vector<16x16xf32>, vector<16x16xf32>, vector<16x16xf32> -> vector<16x16xf32>
    %cst_24 = arith.constant 0.000000e+00 : f32
    %32 = vector.broadcast %cst_24 : f32 to vector<16x16xf32>
    %33 = arith.maximumf %31, %32 : vector<16x16xf32>
    %34 = vector.shape_cast %33 : vector<16x16xf32> to vector<1x16x16xf32>
    %c0_25 = arith.constant 0 : index
    %c0_26 = arith.constant 0 : index
    %c0_27 = arith.constant 0 : index
    %35 = vector.load %arg5[%c0_25, %c0_26, %c0_27] : memref<1x16x16xf32, #tpu.memory_space<vmem>>, vector<1x16x16xf32>
    tpu.vector_store %arg5[%c0_25, %c0_26, %c0_27], %34 {strides = array<i32>} : memref<1x16x16xf32, #tpu.memory_space<vmem>>, vector<1x16x16xf32>,
    return
  }
  func.func @transform_0(%arg0: i32) -> (i32, i32, i32) {
    %c0_i32 = arith.constant 0 : i32
    %c0_i32_0 = arith.constant 0 : i32
    %c0_i32_1 = arith.constant 0 : i32
    return %arg0, %c0_i32, %c0_i32_0 : i32, i32, i32
  }
  func.func @transform_1(%arg0: i32) -> (i32, i32, i32) {
    %c0_i32 = arith.constant 0 : i32
    %c0_i32_0 = arith.constant 0 : i32
    %c0_i32_1 = arith.constant 0 : i32
    %c0_i32_2 = arith.constant 0 : i32
    return %c0_i32, %c0_i32_0, %c0_i32_1 : i32, i32, i32
  }
  func.func @transform_2(%arg0: i32) -> (i32, i32, i32) {
    %c0_i32 = arith.constant 0 : i32
    %c0_i32_0 = arith.constant 0 : i32
    %c0_i32_1 = arith.constant 0 : i32
    %c0_i32_2 = arith.constant 0 : i32
    return %c0_i32, %c0_i32_0, %c0_i32_1 : i32, i32, i32
  }
  func.func @transform_3(%arg0: i32) -> (i32, i32, i32) {
    %c0_i32 = arith.constant 0 : i32
    %c0_i32_0 = arith.constant 0 : i32
    %c0_i32_1 = arith.constant 0 : i32
    %c0_i32_2 = arith.constant 0 : i32
    return %c0_i32, %c0_i32_0, %c0_i32_1 : i32, i32, i32
  }
  func.func @transform_4(%arg0: i32) -> (i32, i32, i32) {
    %c0_i32 = arith.constant 0 : i32
    %c0_i32_0 = arith.constant 0 : i32
    %c0_i32_1 = arith.constant 0 : i32
    return %arg0, %c0_i32, %c0_i32_0 : i32, i32, i32
  }
}

</mosaic_0001>

<llo_original>
// kernel: tpu_custom_call.1
$region0: #{tpu_custom_call.1}
  #allocation0 [shape = 'u32[]', space=smem, size = 0x4, offset = 0x4, fixed_abs, tag = 'smem constant byte address 0x4 - core index']
  #allocation1 [shape = 'u32[144,128]{1,0:T(1,128)}', space=vmem, size = 0x12000, scoped, tag = 'internal scratch']
  %s0 = inlined_call_operand.hbm [shape: f32[2,16,16], index: 0, kind: input, shape index: {}]
  %s1 = inlined_call_operand.hbm [shape: f32[2,16,16], index: 1, kind: input, shape index: {}]
  %s2 = inlined_call_operand.vmem [shape: f32[2,1,16], index: 2, kind: input, shape index: {}]
  %s3 = inlined_call_operand.hbm [shape: f32[2,16,16], index: 3, kind: input, shape index: {}]
  %s4 = inlined_call_operand.hbm [shape: f32[2,16,16], index: 4, kind: output, shape index: {}]
  %s5 = sld [smem:[#allocation0]]
  $region61: #{tpu_custom_call.1} parent=0
    _
  %s7 = ssub.s32 1, %s5
  %s8 = scalar_select 0, %s7, %s5
  $region1: #{tpu_custom_call.1} parent=0
    #allocation2 [shape = 'u8[16384]{0}', space=vmem, size = 0x4000, scoped, tag = 'input window, operand 0']
    #allocation3 [shape = 's32[2]{0}', space=sflag, size = 0x8, scoped, tag = 'scoped memory for tpu_custom_call.1']
    #allocation4 [shape = 's32[2]{0}', space=sflag, size = 0x8, scoped, tag = 'scoped memory for tpu_custom_call.1']
    #allocation5 [shape = 'u8[16384]{0}', space=vmem, size = 0x4000, scoped, tag = 'input window, operand 1, single buffered']
    #allocation6 [shape = 's32[1]{0}', space=sflag, size = 0x4, scoped, tag = 'scoped memory for tpu_custom_call.1']
    #allocation7 [shape = 'u8[16384]{0}', space=vmem, size = 0x4000, scoped, tag = 'input window, operand 3, single buffered']
    #allocation8 [shape = 'u8[16384]{0}', space=vmem, size = 0x4000, scoped, tag = 'output window, operand 0']
    %9 = vsyncpa [#allocation3], 0
    %s10 = scalar_lea.sflag [#allocation3], 1
    %11 = vsyncpa %s10, 0
    %12 = vsyncpa [#allocation6], 0
    %13 = vsyncpa [#allocation4], 0
    %s14 = scalar_lea.sflag [#allocation4], 1
    %15 = vsyncpa %s14, 0
    loop: start=0, step=1, limit=4
    $region2: #{tpu_custom_call.1} parent=1 // loop_pre_header
      _
    $region3: #{tpu_custom_call.1} parent=1 // loop_header
      %s17 = sphi 0, %s21
      %p18 = scmp.ge.s32.totalorder %s17, 4
      %s27 = sphi 0, %s29
      %s30 = sphi 0, %s27
      %s31 = sphi 0, %s30
      %s47 = sphi 0, %s31
      %s51 = sphi 0, %s51
      %s53 = sphi 0, %s51
      %s54 = sphi 0, %s53
      %s68 = sphi 0, %s54
      %s72 = sphi 0, %s72
      %s74 = sphi 0, %s72
      %s75 = sphi 0, %s74
      %s89 = sphi 0, %s75
      %s93 = sphi 0, %s93
      %s95 = sphi 0, %s93
      %s96 = sphi 0, %s95
      %s110 = sphi 0, %s96
      %s116 = sphi 0, %s118
      %s119 = sphi 0, %s116
      %s120 = sphi 0, %s119
      %s136 = sphi 0, %s120
    $region4: #{tpu_custom_call.1} parent=1 // loop_header_branch
      %20 = sbr.rel (%p18) target = $region8
    $region5: #{tpu_custom_call.1} parent=1 // loop_body
      %s22 = ssub.s32 %s17, 1
      %s23 = ssub.s32 %s17, 2
      %s24 = sadd.s32 %s17, 1
      %s25 = ssub.s32 %s17, %s24
      %p26 = scmp.eq.s32.totalorder %s25, 0
      %s28 = sadd.s32 %s27, 1
      %s29 = scalar_select %p26, %s27, %s28
      %p32 = pneg %p26
      %p33 = scmp.eq.s32.totalorder %s17, 1
      %p34 = por %p32, %p33
      %p35 = scmp.ne.s32.totalorder %s27, %s30
      %p36 = scmp.eq.s32.totalorder %s17, 0
      %p37 = por %p35, %p36
      %p38 = scmp.ne.s32.totalorder %s27, %s30
      %p39 = scmp.eq.s32.totalorder %s22, 1
      %p40 = por %p38, %p39
      %p41 = scmp.ne.s32.totalorder %s30, %s31
      %p42 = scmp.eq.s32.totalorder %s22, 0
      %p43 = por %p41, %p42
      %p44 = scmp.ne.s32.totalorder %s30, %s31
      %p45 = scmp.eq.s32.totalorder %s23, 1
      %p46 = por %p44, %p45
      %p48 = scmp.ne.s32.totalorder %s31, %s47
      %p49 = scmp.eq.s32.totalorder %s23, 0
      %p50 = por %p48, %p49
      %s52 = sadd.s32 %s51, 1
      %p55 = scmp.eq.s32.totalorder %s17, 1
      %p56 = scmp.ne.s32.totalorder %s51, %s53
      %p57 = scmp.eq.s32.totalorder %s17, 0
      %p58 = por %p56, %p57
      %p59 = scmp.ne.s32.totalorder %s51, %s53
      %p60 = scmp.eq.s32.totalorder %s22, 1
      %p61 = por %p59, %p60
      %p62 = scmp.ne.s32.totalorder %s53, %s54
      %p63 = scmp.eq.s32.totalorder %s22, 0
      %p64 = por %p62, %p63
      %p65 = scmp.ne.s32.totalorder %s53, %s54
      %p66 = scmp.eq.s32.totalorder %s23, 1
      %p67 = por %p65, %p66
      %p69 = scmp.ne.s32.totalorder %s54, %s68
      %p70 = scmp.eq.s32.totalorder %s23, 0
      %p71 = por %p69, %p70
      %s73 = sadd.s32 %s72, 1
      %p76 = scmp.eq.s32.totalorder %s17, 1
      %p77 = scmp.ne.s32.totalorder %s72, %s74
      %p78 = scmp.eq.s32.totalorder %s17, 0
      %p79 = por %p77, %p78
      %p80 = scmp.ne.s32.totalorder %s72, %s74
      %p81 = scmp.eq.s32.totalorder %s22, 1
      %p82 = por %p80, %p81
      %p83 = scmp.ne.s32.totalorder %s74, %s75
      %p84 = scmp.eq.s32.totalorder %s22, 0
      %p85 = por %p83, %p84
      %p86 = scmp.ne.s32.totalorder %s74, %s75
      %p87 = scmp.eq.s32.totalorder %s23, 1
      %p88 = por %p86, %p87
      %p90 = scmp.ne.s32.totalorder %s75, %s89
      %p91 = scmp.eq.s32.totalorder %s23, 0
      %p92 = por %p90, %p91
      %s94 = sadd.s32 %s93, 1
      %p97 = scmp.eq.s32.totalorder %s17, 1
      %p98 = scmp.ne.s32.totalorder %s93, %s95
      %p99 = scmp.eq.s32.totalorder %s17, 0
      %p100 = por %p98, %p99
      %p101 = scmp.ne.s32.totalorder %s93, %s95
      %p102 = scmp.eq.s32.totalorder %s22, 1
      %p103 = por %p101, %p102
      %p104 = scmp.ne.s32.totalorder %s95, %s96
      %p105 = scmp.eq.s32.totalorder %s22, 0
      %p106 = por %p104, %p105
      %p107 = scmp.ne.s32.totalorder %s95, %s96
      %p108 = scmp.eq.s32.totalorder %s23, 1
      %p109 = por %p107, %p108
      %p111 = scmp.ne.s32.totalorder %s96, %s110
      %p112 = scmp.eq.s32.totalorder %s23, 0
      %p113 = por %p111, %p112
      %s114 = ssub.s32 %s17, %s24
      %p115 = scmp.eq.s32.totalorder %s114, 0
      %s117 = sadd.s32 %s116, 1
      %s118 = scalar_select %p115, %s116, %s117
      %p121 = pneg %p115
      %p122 = scmp.eq.s32.totalorder %s17, 1
      %p123 = por %p121, %p122
      %p124 = scmp.ne.s32.totalorder %s116, %s119
      %p125 = scmp.eq.s32.totalorder %s17, 0
      %p126 = por %p124, %p125
      %p127 = scmp.ne.s32.totalorder %s116, %s119
      %p128 = scmp.eq.s32.totalorder %s22, 1
      %p129 = por %p127, %p128
      %p130 = scmp.ne.s32.totalorder %s119, %s120
      %p131 = scmp.eq.s32.totalorder %s22, 0
      %p132 = por %p130, %p131
      %p133 = scmp.ne.s32.totalorder %s119, %s120
      %p134 = scmp.eq.s32.totalorder %s23, 1
      %p135 = por %p133, %p134
      %p137 = scmp.ne.s32.totalorder %s120, %s136
      %p138 = scmp.eq.s32.totalorder %s23, 0
      %p139 = por %p137, %p138
      %p140 = scmp.le.s32.totalorder 1, %s17
      %p141 = scmp.lt.s32.totalorder %s17, 3
      %p142 = pnand %p140, %p141
      %p143 = pneg %p142
      // Predicated region
      $region9: #{tpu_custom_call.1} parent=5 // pred_check
        _
      $region10: #{tpu_custom_call.1} parent=5 // pred_check_branch
        %145 = sbr.rel (%p142) target = $region12
      $region11: #{tpu_custom_call.1} parent=5 // pred_region
        %s146 = ssub.s32 %s17, 1
        // Predicated region
        $region13: #{tpu_custom_call.1} parent=11 // pred_check
          %p147 = pneg %p64
        $region14: #{tpu_custom_call.1} parent=11 // pred_check_branch
          %149 = sbr.rel (%p147) target = $region16
        $region15: #{tpu_custom_call.1} parent=11 // pred_region
          %s151 = ssub.s32 512, 512
          %152 = vsyncadd [#allocation6], %s151
          %s153 = sshll.u32 [#allocation5], 4
          %s154 = int_to_ptr.vmem [resolvable:$true] %s153
          %159 = dma.hbm_to_vmem [thread:$0]  %s1, 512, %s154, [#allocation6], 128, 128, 8
        $region16: #{tpu_custom_call.1} parent=11 // pred_fallthru
          _
        // Predicated region
        $region17: #{tpu_custom_call.1} parent=11 // pred_check
          %p160 = pneg %p85
        $region18: #{tpu_custom_call.1} parent=11 // pred_check_branch
          %162 = sbr.rel (%p160) target = $region20
        $region19: #{tpu_custom_call.1} parent=11 // pred_region
          _
        $region20: #{tpu_custom_call.1} parent=11 // pred_fallthru
          _
        // Predicated region
        $region21: #{tpu_custom_call.1} parent=11 // pred_check
          %p163 = pneg %p106
        $region22: #{tpu_custom_call.1} parent=11 // pred_check_branch
          %165 = sbr.rel (%p163) target = $region24
        $region23: #{tpu_custom_call.1} parent=11 // pred_region
          %s167 = ssub.s32 512, 512
          %168 = vsyncadd [#allocation6], %s167
          %s169 = sshll.u32 [#allocation7], 4
          %s170 = int_to_ptr.vmem [resolvable:$true] %s169
          %175 = dma.hbm_to_vmem [thread:$0]  %s3, 512, %s170, [#allocation6], 128, 128, 8
        $region24: #{tpu_custom_call.1} parent=11 // pred_fallthru
          _
      $region12: #{tpu_custom_call.1} parent=5 // pred_fallthru
        _
      %p176 = scmp.lt.s32.totalorder %s17, 2
      // Predicated region
      $region25: #{tpu_custom_call.1} parent=5 // pred_check
        %p177 = pneg %p176
      $region26: #{tpu_custom_call.1} parent=5 // pred_check_branch
        %179 = sbr.rel (%p177) target = $region28
      $region27: #{tpu_custom_call.1} parent=5 // pred_region
        // Predicated region
        $region29: #{tpu_custom_call.1} parent=27 // pred_check
          %p180 = pneg %p37
        $region30: #{tpu_custom_call.1} parent=27 // pred_check_branch
          %182 = sbr.rel (%p180) target = $region32
        $region31: #{tpu_custom_call.1} parent=27 // pred_region
          %s183 = sand.u32 %s27, 1
          %s184 = scalar_lea.sflag [#allocation3], %s183
          %s185 = sand.u32 %s27, 1
          %s186 = smul.addr %s185, 16
          %s187 = scalar_lea.vmem [#allocation2], %s186
          %s189 = ssub.s32 256, 256
          %190 = vsyncadd %s184, %s189
          %s191 = smul.addr %s17, 2
          %s192 = smul.addr %s191, 128
          %s193 = scalar_lea.hbm %s0, %s192
          %s194 = sshll.u32 %s187, 4
          %s195 = int_to_ptr.vmem [resolvable:$true] %s194
          %200 = dma.hbm_to_vmem [thread:$0]  %s193, 256, %s195, %s184, 128, 128, 8
        $region32: #{tpu_custom_call.1} parent=27 // pred_fallthru
          _
      $region28: #{tpu_custom_call.1} parent=5 // pred_fallthru
        _
      %p201 = scmp.le.s32.totalorder 1, %s17
      %p202 = scmp.lt.s32.totalorder %s17, 3
      %p203 = pnand %p201, %p202
      %p204 = pneg %p203
      // Predicated region
      $region33: #{tpu_custom_call.1} parent=5 // pred_check
        _
      $region34: #{tpu_custom_call.1} parent=5 // pred_check_branch
        %206 = sbr.rel (%p203) target = $region36
      $region35: #{tpu_custom_call.1} parent=5 // pred_region
        %s207 = ssub.s32 %s17, 1
        %s208 = sand.u32 %s30, 1
        %s209 = scalar_lea.sflag [#allocation3], %s208
        %s210 = sand.u32 %s30, 1
        %s211 = smul.addr %s210, 16
        %s212 = scalar_lea.vmem [#allocation2], %s211
        // Predicated region
        $region37: #{tpu_custom_call.1} parent=35 // pred_check
          %p213 = pneg %p43
        $region38: #{tpu_custom_call.1} parent=35 // pred_check_branch
          %215 = sbr.rel (%p213) target = $region40
        $region39: #{tpu_custom_call.1} parent=35 // pred_region
          %216 = dma.done %s209, 256
        $region40: #{tpu_custom_call.1} parent=35 // pred_fallthru
          _
        // Predicated region
        $region41: #{tpu_custom_call.1} parent=35 // pred_check
          %p217 = pneg %p64
        $region42: #{tpu_custom_call.1} parent=35 // pred_check_branch
          %219 = sbr.rel (%p217) target = $region44
        $region43: #{tpu_custom_call.1} parent=35 // pred_region
          %220 = dma.done [#allocation6], 512
        $region44: #{tpu_custom_call.1} parent=35 // pred_fallthru
          _
        // Predicated region
        $region45: #{tpu_custom_call.1} parent=35 // pred_check
          %p221 = pneg %p106
        $region46: #{tpu_custom_call.1} parent=35 // pred_check_branch
          %223 = sbr.rel (%p221) target = $region48
        $region47: #{tpu_custom_call.1} parent=35 // pred_region
          %224 = dma.done [#allocation6], 512
        $region48: #{tpu_custom_call.1} parent=35 // pred_fallthru
          _
        %s225 = sand.u32 %s30, 1
        %s226 = scalar_lea.sflag [#allocation3], %s225
        %s227 = sand.u32 %s30, 1
        %s228 = smul.addr %s227, 16
        %s229 = scalar_lea.vmem [#allocation2], %s228
        %p230 = pneg %p43
        %p231 = pneg %p40
        %p232 = pneg %p64
        %p233 = pneg %p61
        %p234 = pneg %p85
        %p235 = pneg %p82
        %p236 = pneg %p106
        %p237 = pneg %p103
        %p238 = pneg %p132
        %p239 = pneg %p129
        %s240 = sand.u32 %s119, 1
        %s241 = scalar_lea.sflag [#allocation4], %s240
        %s242 = sand.u32 %s119, 1
        %s243 = smul.addr %s242, 16
        %s244 = scalar_lea.vmem [#allocation8], %s243
        %v245 = vld [vmem:[%s212] sm:$0xff]
        %v246 = vld [vmem:[%s212 + $0x8] sm:$0xff]
        %v247 = vld [vmem:[#allocation5] sm:$0xff]
        %v248 = vld [vmem:[#allocation5 + $0x8] sm:$0xff]
        %v249 = vld [vmem:[%s2] sm:$0x1]
        %v250 = vld [vmem:[#allocation7] sm:$0xff]
        %v251 = vld [vmem:[#allocation7 + $0x8] sm:$0xff]
        %v253 = vlaneseq
        %v254 = vshrl.u32 %v253, 7
        %v255 = vsub.s32 0, %v254
        %v256 = vrot.slane %v249, %v255
        %vm258 = vcmask 130048
        %v260 = vsel %vm258, %v245, 0
        %v263 = vsel %vm258, %v246, 0
        %265 = vmatprep.subr.mxu0 0.0
        %266 = vmatpush1.msra.mxu0 %v247
        %267 = vmatprep.subr.mxu0 0.0
        %268 = vmatpush1.msra.mxu0 %v248
        %269 = vmatprep.subr.mxu0 0.0
        %270 = vmatpush1.msra.mxu0 0.0
        %271 = vmatprep.subr.mxu0 0.0
        %272 = vmatpush1.msra.mxu0 0.0
        %273 = vmatprep.subr.mxu0 0.0
        %274 = vmatpush1.msra.mxu0 0.0
        %275 = vmatprep.subr.mxu0 0.0
        %276 = vmatpush1.msra.mxu0 0.0
        %277 = vmatprep.subr.mxu0 0.0
        %278 = vmatpush1.msra.mxu0 0.0
        %279 = vmatprep.subr.mxu0 0.0
        %280 = vmatpush1.msra.mxu0 0.0
        %281 = vmatprep.subr.mxu0 0.0
        %282 = vmatpush1.msra.mxu0 0.0
        %283 = vmatprep.subr.mxu0 0.0
        %284 = vmatpush1.msra.mxu0 0.0
        %285 = vmatprep.subr.mxu0 0.0
        %286 = vmatpush1.msra.mxu0 0.0
        %287 = vmatprep.subr.mxu0 0.0
        %288 = vmatpush1.msra.mxu0 0.0
        %289 = vmatprep.subr.mxu0 0.0
        %290 = vmatpush1.msra.mxu0 0.0
        %291 = vmatprep.subr.mxu0 0.0
        %292 = vmatpush1.msra.mxu0 0.0
        %293 = vmatprep.subr.mxu0 0.0
        %294 = vmatpush1.msra.mxu0 0.0
        %295 = vmatprep.subr.mxu0 0.0
        %296 = vmatpush1.msra.mxu0 0.0
        %297 = vmatprep.subr.mxu0 0.0
        %298 = vmatpush1.msra.mxu0 0.0
        %299 = vmatprep.subr.mxu0 0.0
        %300 = vmatpush1.msra.mxu0 0.0
        %301 = vmatprep.subr.mxu0 0.0
        %302 = vmatpush1.msra.mxu0 0.0
        %303 = vmatprep.subr.mxu0 0.0
        %304 = vmatpush1.msra.mxu0 0.0
        %305 = vmatprep.subr.mxu0 0.0
        %306 = vmatpush1.msra.mxu0 0.0
        %307 = vmatprep.subr.mxu0 0.0
        %308 = vmatpush1.msra.mxu0 0.0
        %309 = vmatprep.subr.mxu0 0.0
        %310 = vmatpush1.msra.mxu0 0.0
        %311 = vmatprep.subr.mxu0 0.0
        %312 = vmatpush1.msra.mxu0 0.0
        %313 = vmatprep.subr.mxu0 0.0
        %314 = vmatpush1.msra.mxu0 0.0
        %315 = vmatprep.subr.mxu0 0.0
        %316 = vmatpush1.msra.mxu0 0.0
        %317 = vmatprep.subr.mxu0 0.0
        %318 = vmatpush1.msra.mxu0 0.0
        %319 = vmatprep.subr.mxu0 0.0
        %320 = vmatpush1.msra.mxu0 0.0
        %321 = vmatprep.subr.mxu0 0.0
        %322 = vmatpush1.msra.mxu0 0.0
        %323 = vmatprep.subr.mxu0 0.0
        %324 = vmatpush1.msra.mxu0 0.0
        %325 = vmatprep.subr.mxu0 0.0
        %326 = vmatpush1.msra.mxu0 0.0
        %327 = vmatprep.subr.mxu0 0.0
        %328 = vmatpush1.msra.mxu0 0.0
        %329 = vmatprep.mubr.f32.mxu0 0.0
        %330 = vmatmul.mubr.f32.gmra.mrb[0].mxu0 %v260
        %v331 = vpop.f32.mrb[0].mxu0
        %v332 = vadd.f32 %v256, %v331
        %v333 = vpop.f32.mrb[0].mxu0
        %334 = vmatprep.mubr.f32.mxu0 0.0
        %335 = vmatmul.mubr.f32.gmra.mrb[0].mxu0 %v263
        %v336 = vpop.f32.mrb[0].mxu0
        %v337 = vadd.f32 %v256, %v336
        %v338 = vpop.f32.mrb[0].mxu0
        %339 = vdwg.mxu0
        %v340 = vadd.f32 %v332, %v245
        %v341 = vadd.f32 %v337, %v246
        %v342 = vmax.f32 %v340, 0.0
        %v343 = vmax.f32 %v341, 0.0
        %v345 = vsel %vm258, %v250, 0
        %v348 = vsel %vm258, %v251, 0
        %350 = vmatprep.subr.mxu0 0.0
        %351 = vmatpush1.msra.mxu0 %v342
        %352 = vmatprep.subr.mxu0 0.0
        %353 = vmatpush1.msra.mxu0 %v343
        %354 = vmatprep.subr.mxu0 0.0
        %355 = vmatpush1.msra.mxu0 0.0
        %356 = vmatprep.subr.mxu0 0.0
        %357 = vmatpush1.msra.mxu0 0.0
        %358 = vmatprep.subr.mxu0 0.0
        %359 = vmatpush1.msra.mxu0 0.0
        %360 = vmatprep.subr.mxu0 0.0
        %361 = vmatpush1.msra.mxu0 0.0
        %362 = vmatprep.subr.mxu0 0.0
        %363 = vmatpush1.msra.mxu0 0.0
        %364 = vmatprep.subr.mxu0 0.0
        %365 = vmatpush1.msra.mxu0 0.0
        %366 = vmatprep.subr.mxu0 0.0
        %367 = vmatpush1.msra.mxu0 0.0
        %368 = vmatprep.subr.mxu0 0.0
        %369 = vmatpush1.msra.mxu0 0.0
        %370 = vmatprep.subr.mxu0 0.0
        %371 = vmatpush1.msra.mxu0 0.0
        %372 = vmatprep.subr.mxu0 0.0
        %373 = vmatpush1.msra.mxu0 0.0
        %374 = vmatprep.subr.mxu0 0.0
        %375 = vmatpush1.msra.mxu0 0.0
        %376 = vmatprep.subr.mxu0 0.0
        %377 = vmatpush1.msra.mxu0 0.0
        %378 = vmatprep.subr.mxu0 0.0
        %379 = vmatpush1.msra.mxu0 0.0
        %380 = vmatprep.subr.mxu0 0.0
        %381 = vmatpush1.msra.mxu0 0.0
        %382 = vmatprep.subr.mxu0 0.0
        %383 = vmatpush1.msra.mxu0 0.0
        %384 = vmatprep.subr.mxu0 0.0
        %385 = vmatpush1.msra.mxu0 0.0
        %386 = vmatprep.subr.mxu0 0.0
        %387 = vmatpush1.msra.mxu0 0.0
        %388 = vmatprep.subr.mxu0 0.0
        %389 = vmatpush1.msra.mxu0 0.0
        %390 = vmatprep.subr.mxu0 0.0
        %391 = vmatpush1.msra.mxu0 0.0
        %392 = vmatprep.subr.mxu0 0.0
        %393 = vmatpush1.msra.mxu0 0.0
        %394 = vmatprep.subr.mxu0 0.0
        %395 = vmatpush1.msra.mxu0 0.0
        %396 = vmatprep.subr.mxu0 0.0
        %397 = vmatpush1.msra.mxu0 0.0
        %398 = vmatprep.subr.mxu0 0.0
        %399 = vmatpush1.msra.mxu0 0.0
        %400 = vmatprep.subr.mxu0 0.0
        %401 = vmatpush1.msra.mxu0 0.0
        %402 = vmatprep.subr.mxu0 0.0
        %403 = vmatpush1.msra.mxu0 0.0
        %404 = vmatprep.subr.mxu0 0.0
        %405 = vmatpush1.msra.mxu0 0.0
        %406 = vmatprep.subr.mxu0 0.0
        %407 = vmatpush1.msra.mxu0 0.0
        %408 = vmatprep.subr.mxu0 0.0
        %409 = vmatpush1.msra.mxu0 0.0
        %410 = vmatprep.subr.mxu0 0.0
        %411 = vmatpush1.msra.mxu0 0.0
        %412 = vmatprep.subr.mxu0 0.0
        %413 = vmatpush1.msra.mxu0 0.0
        %414 = vmatprep.mubr.f32.mxu0 0.0
        %415 = vmatmul.mubr.f32.gmra.mrb[0].mxu0 %v345
        %v416 = vpop.f32.mrb[0].mxu0
        %v417 = vadd.f32 0.0, %v416
        %v418 = vpop.f32.mrb[0].mxu0
        %419 = vmatprep.mubr.f32.mxu0 0.0
        %420 = vmatmul.mubr.f32.gmra.mrb[0].mxu0 %v348
        %v421 = vpop.f32.mrb[0].mxu0
        %v422 = vadd.f32 0.0, %v421
        %v423 = vpop.f32.mrb[0].mxu0
        %424 = vdwg.mxu0
        %s425 = scalar_lea.vmem [#allocation5], 16
        %v426 = vld [vmem:[%s425] sm:$0xff]
        %v427 = vld [vmem:[%s425 + $0x8] sm:$0xff]
        %s428 = scalar_lea.vmem %s2, 1
        %v429 = vld [vmem:[%s428] sm:$0x1]
        %s430 = scalar_lea.vmem [#allocation7], 16
        %v431 = vld [vmem:[%s430] sm:$0xff]
        %v432 = vld [vmem:[%s430 + $0x8] sm:$0xff]
        %v434 = vlaneseq
        %v435 = vshrl.u32 %v434, 7
        %v436 = vsub.s32 0, %v435
        %v437 = vrot.slane %v429, %v436
        %v440 = vsel %vm258, %v417, 0
        %v443 = vsel %vm258, %v422, 0
        %445 = vmatprep.subr.mxu0 0.0
        %446 = vmatpush1.msra.mxu0 %v426
        %447 = vmatprep.subr.mxu0 0.0
        %448 = vmatpush1.msra.mxu0 %v427
        %449 = vmatprep.subr.mxu0 0.0
        %450 = vmatpush1.msra.mxu0 0.0
        %451 = vmatprep.subr.mxu0 0.0
        %452 = vmatpush1.msra.mxu0 0.0
        %453 = vmatprep.subr.mxu0 0.0
        %454 = vmatpush1.msra.mxu0 0.0
        %455 = vmatprep.subr.mxu0 0.0
        %456 = vmatpush1.msra.mxu0 0.0
        %457 = vmatprep.subr.mxu0 0.0
        %458 = vmatpush1.msra.mxu0 0.0
        %459 = vmatprep.subr.mxu0 0.0
        %460 = vmatpush1.msra.mxu0 0.0
        %461 = vmatprep.subr.mxu0 0.0
        %462 = vmatpush1.msra.mxu0 0.0
        %463 = vmatprep.subr.mxu0 0.0
        %464 = vmatpush1.msra.mxu0 0.0
        %465 = vmatprep.subr.mxu0 0.0
        %466 = vmatpush1.msra.mxu0 0.0
        %467 = vmatprep.subr.mxu0 0.0
        %468 = vmatpush1.msra.mxu0 0.0
        %469 = vmatprep.subr.mxu0 0.0
        %470 = vmatpush1.msra.mxu0 0.0
        %471 = vmatprep.subr.mxu0 0.0
        %472 = vmatpush1.msra.mxu0 0.0
        %473 = vmatprep.subr.mxu0 0.0
        %474 = vmatpush1.msra.mxu0 0.0
        %475 = vmatprep.subr.mxu0 0.0
        %476 = vmatpush1.msra.mxu0 0.0
        %477 = vmatprep.subr.mxu0 0.0
        %478 = vmatpush1.msra.mxu0 0.0
        %479 = vmatprep.subr.mxu0 0.0
        %480 = vmatpush1.msra.mxu0 0.0
        %481 = vmatprep.subr.mxu0 0.0
        %482 = vmatpush1.msra.mxu0 0.0
        %483 = vmatprep.subr.mxu0 0.0
        %484 = vmatpush1.msra.mxu0 0.0
        %485 = vmatprep.subr.mxu0 0.0
        %486 = vmatpush1.msra.mxu0 0.0
        %487 = vmatprep.subr.mxu0 0.0
        %488 = vmatpush1.msra.mxu0 0.0
        %489 = vmatprep.subr.mxu0 0.0
        %490 = vmatpush1.msra.mxu0 0.0
        %491 = vmatprep.subr.mxu0 0.0
        %492 = vmatpush1.msra.mxu0 0.0
        %493 = vmatprep.subr.mxu0 0.0
        %494 = vmatpush1.msra.mxu0 0.0
        %495 = vmatprep.subr.mxu0 0.0
        %496 = vmatpush1.msra.mxu0 0.0
        %497 = vmatprep.subr.mxu0 0.0
        %498 = vmatpush1.msra.mxu0 0.0
        %499 = vmatprep.subr.mxu0 0.0
        %500 = vmatpush1.msra.mxu0 0.0
        %501 = vmatprep.subr.mxu0 0.0
        %502 = vmatpush1.msra.mxu0 0.0
        %503 = vmatprep.subr.mxu0 0.0
        %504 = vmatpush1.msra.mxu0 0.0
        %505 = vmatprep.subr.mxu0 0.0
        %506 = vmatpush1.msra.mxu0 0.0
        %507 = vmatprep.subr.mxu0 0.0
        %508 = vmatpush1.msra.mxu0 0.0
        %509 = vmatprep.mubr.f32.mxu0 0.0
        %510 = vmatmul.mubr.f32.gmra.mrb[0].mxu0 %v440
        %v511 = vpop.f32.mrb[0].mxu0
        %v512 = vadd.f32 %v437, %v511
        %v513 = vpop.f32.mrb[0].mxu0
        %514 = vmatprep.mubr.f32.mxu0 0.0
        %515 = vmatmul.mubr.f32.gmra.mrb[0].mxu0 %v443
        %v516 = vpop.f32.mrb[0].mxu0
        %v517 = vadd.f32 %v437, %v516
        %v518 = vpop.f32.mrb[0].mxu0
        %519 = vdwg.mxu0
        %v520 = vadd.f32 %v512, %v417
        %v521 = vadd.f32 %v517, %v422
        %v522 = vmax.f32 %v520, 0.0
        %v523 = vmax.f32 %v521, 0.0
        %v525 = vsel %vm258, %v431, 0
        %v528 = vsel %vm258, %v432, 0
        %530 = vmatprep.subr.mxu0 0.0
        %531 = vmatpush1.msra.mxu0 %v522
        %532 = vmatprep.subr.mxu0 0.0
        %533 = vmatpush1.msra.mxu0 %v523
        %534 = vmatprep.subr.mxu0 0.0
        %535 = vmatpush1.msra.mxu0 0.0
        %536 = vmatprep.subr.mxu0 0.0
        %537 = vmatpush1.msra.mxu0 0.0
        %538 = vmatprep.subr.mxu0 0.0
        %539 = vmatpush1.msra.mxu0 0.0
        %540 = vmatprep.subr.mxu0 0.0
        %541 = vmatpush1.msra.mxu0 0.0
        %542 = vmatprep.subr.mxu0 0.0
        %543 = vmatpush1.msra.mxu0 0.0
        %544 = vmatprep.subr.mxu0 0.0
        %545 = vmatpush1.msra.mxu0 0.0
        %546 = vmatprep.subr.mxu0 0.0
        %547 = vmatpush1.msra.mxu0 0.0
        %548 = vmatprep.subr.mxu0 0.0
        %549 = vmatpush1.msra.mxu0 0.0
        %550 = vmatprep.subr.mxu0 0.0
        %551 = vmatpush1.msra.mxu0 0.0
        %552 = vmatprep.subr.mxu0 0.0
        %553 = vmatpush1.msra.mxu0 0.0
        %554 = vmatprep.subr.mxu0 0.0
        %555 = vmatpush1.msra.mxu0 0.0
        %556 = vmatprep.subr.mxu0 0.0
        %557 = vmatpush1.msra.mxu0 0.0
        %558 = vmatprep.subr.mxu0 0.0
        %559 = vmatpush1.msra.mxu0 0.0
        %560 = vmatprep.subr.mxu0 0.0
        %561 = vmatpush1.msra.mxu0 0.0
        %562 = vmatprep.subr.mxu0 0.0
        %563 = vmatpush1.msra.mxu0 0.0
        %564 = vmatprep.subr.mxu0 0.0
        %565 = vmatpush1.msra.mxu0 0.0
        %566 = vmatprep.subr.mxu0 0.0
        %567 = vmatpush1.msra.mxu0 0.0
        %568 = vmatprep.subr.mxu0 0.0
        %569 = vmatpush1.msra.mxu0 0.0
        %570 = vmatprep.subr.mxu0 0.0
        %571 = vmatpush1.msra.mxu0 0.0
        %572 = vmatprep.subr.mxu0 0.0
        %573 = vmatpush1.msra.mxu0 0.0
        %574 = vmatprep.subr.mxu0 0.0
        %575 = vmatpush1.msra.mxu0 0.0
        %576 = vmatprep.subr.mxu0 0.0
        %577 = vmatpush1.msra.mxu0 0.0
        %578 = vmatprep.subr.mxu0 0.0
        %579 = vmatpush1.msra.mxu0 0.0
        %580 = vmatprep.subr.mxu0 0.0
        %581 = vmatpush1.msra.mxu0 0.0
        %582 = vmatprep.subr.mxu0 0.0
        %583 = vmatpush1.msra.mxu0 0.0
        %584 = vmatprep.subr.mxu0 0.0
        %585 = vmatpush1.msra.mxu0 0.0
        %586 = vmatprep.subr.mxu0 0.0
        %587 = vmatpush1.msra.mxu0 0.0
        %588 = vmatprep.subr.mxu0 0.0
        %589 = vmatpush1.msra.mxu0 0.0
        %590 = vmatprep.subr.mxu0 0.0
        %591 = vmatpush1.msra.mxu0 0.0
        %592 = vmatprep.subr.mxu0 0.0
        %593 = vmatpush1.msra.mxu0 0.0
        %594 = vmatprep.mubr.f32.mxu0 0.0
        %595 = vmatmul.mubr.f32.gmra.mrb[0].mxu0 %v525
        %v596 = vpop.f32.mrb[0].mxu0
        %v597 = vadd.f32 0.0, %v596
        %v598 = vpop.f32.mrb[0].mxu0
        %599 = vmatprep.mubr.f32.mxu0 0.0
        %600 = vmatmul.mubr.f32.gmra.mrb[0].mxu0 %v528
        %v601 = vpop.f32.mrb[0].mxu0
        %v602 = vadd.f32 0.0, %v601
        %v603 = vpop.f32.mrb[0].mxu0
        %604 = vdwg.mxu0
        %v605 = vmax.f32 %v597, 0.0
        %v606 = vmax.f32 %v602, 0.0
        %607 = vst.msk [vmem:[%s244] sm:$0xff] %vm258, %v605
        %608 = vst.msk [vmem:[%s244 + $0x8] sm:$0xff] %vm258, %v606
        %s609 = sand.u32 %s119, 1
        %s610 = scalar_lea.sflag [#allocation4], %s609
        %s611 = sand.u32 %s119, 1
        %s612 = smul.addr %s611, 16
        %s613 = scalar_lea.vmem [#allocation8], %s612
        // Predicated region
        $region49: #{tpu_custom_call.1} parent=35 // pred_check
          %p614 = pneg %p129
        $region50: #{tpu_custom_call.1} parent=35 // pred_check_branch
          %616 = sbr.rel (%p614) target = $region52
        $region51: #{tpu_custom_call.1} parent=35 // pred_region
          %s618 = ssub.s32 256, 256
          %619 = vsyncadd %s610, %s618
          %s620 = smul.addr %s22, 2
          %s621 = smul.addr %s620, 128
          %s622 = scalar_lea.hbm %s4, %s621
          %s623 = sshll.u32 %s613, 4
          %s624 = int_to_ptr.vmem [resolvable:$true] %s623
          %629 = dma.vmem_to_hbm [thread:$0]  %s624, 256, %s622, %s610, 128, 128, 8
        $region52: #{tpu_custom_call.1} parent=35 // pred_fallthru
          _
      $region36: #{tpu_custom_call.1} parent=5 // pred_fallthru
        _
      %p630 = scmp.le.s32.totalorder 2, %s17
      // Predicated region
      $region53: #{tpu_custom_call.1} parent=5 // pred_check
        %p631 = pneg %p630
      $region54: #{tpu_custom_call.1} parent=5 // pred_check_branch
        %633 = sbr.rel (%p631) target = $region56
      $region55: #{tpu_custom_call.1} parent=5 // pred_region
        %s634 = ssub.s32 %s17, 2
        // Predicated region
        $region57: #{tpu_custom_call.1} parent=55 // pred_check
          %p635 = pneg %p135
        $region58: #{tpu_custom_call.1} parent=55 // pred_check_branch
          %637 = sbr.rel (%p635) target = $region60
        $region59: #{tpu_custom_call.1} parent=55 // pred_region
          %s638 = sand.u32 %s120, 1
          %s639 = scalar_lea.sflag [#allocation4], %s638
          %s640 = sand.u32 %s120, 1
          %s641 = smul.addr %s640, 16
          %s642 = scalar_lea.vmem [#allocation8], %s641
          %643 = dma.done %s639, 256
        $region60: #{tpu_custom_call.1} parent=55 // pred_fallthru
          _
      $region56: #{tpu_custom_call.1} parent=5 // pred_fallthru
        _
    $region6: #{tpu_custom_call.1} parent=1 // loop_footer
      %s21 = sadd.s32 1, %s17
    $region7: #{tpu_custom_call.1} parent=1 // loop_footer_branch
      %16 = sbr.rel target = $region3
    $region8: #{tpu_custom_call.1} parent=1 // loop_exit
      _
    %644 = vsyncpa [#allocation3], 1
    %s645 = scalar_lea.sflag [#allocation3], 1
    %646 = vsyncpa %s645, 1
    %647 = vsyncpa [#allocation6], 1
    %648 = vsyncpa [#allocation4], 1
    %s649 = scalar_lea.sflag [#allocation4], 1
    %650 = vsyncpa %s649, 1

</llo_original>
